<compile_context>
chip_gen: v7x
topology: tpu7x:2x2x1
jax: 0.10.0
libtpu: 0.0.40
codegen_flags: <defaults>
</compile_context>

<pallas_src>
import functools

import jax
import jax.numpy as jnp
from jax.experimental import pallas as pl
from jax.experimental.pallas import tpu as pltpu


# ---------------------------------------------------------------------------
# Pallas kernel:  out = alpha * tanh((adj @ emb) @ W) + beta * resid
# ---------------------------------------------------------------------------
def _gcn_hop_kernel(adj_ref, emb_ref, w_ref, resid_ref, out_ref, *, alpha, beta):
    k = pl.program_id(1)

    # The f32 output tile doubles as the reduction accumulator; it stays
    # VMEM-resident across the k axis (same block index) and is written back
    # to HBM once per row tile.
    @pl.when(k == 0)
    def _():
        out_ref[...] = jnp.zeros_like(out_ref)

    # Streamed bf16 adjacency tile x bf16 embedding tile -> f32 accumulator.
    out_ref[...] += jnp.dot(adj_ref[...], emb_ref[...],
                            preferred_element_type=jnp.float32)

    @pl.when(k == pl.num_programs(1) - 1)
    def _():
        prop = out_ref[...]
        h = jnp.tanh(jnp.dot(prop, w_ref[...],
                             preferred_element_type=jnp.float32))
        out_ref[...] = (alpha * h + beta * resid_ref[...]).astype(out_ref.dtype)


def _round_up(x, m):
    return (x + m - 1) // m * m


def _pad2d(x, rows, cols, dtype):
    """Cast + zero-pad to (rows, cols); skips the pad when already aligned."""
    r, c = x.shape
    x = x.astype(dtype)
    if r == rows and c == cols:
        return x
    return jnp.pad(x, ((0, rows - r), (0, cols - c)))


def gcn_hop(adj, emb, w, resid, alpha, beta, *, tm=512, tk=1024):
    """Tiled TPU evaluation of  alpha * tanh((adj @ emb) @ w) + beta * resid.

    adj:   (N, M) dense adjacency (streamed as bf16)
    emb:   (M, H) embeddings
    w:     (H, H) hop weight
    resid: (N, H) residual term
    """
    n, m = adj.shape
    h = emb.shape[1]
    assert emb.shape[0] == m and resid.shape == (n, h) and w.shape == (h, h)

    hp = _round_up(h, 128)            # lane-dense feature width
    tm = min(tm, _round_up(n, 16))    # sublane-aligned row tile (bf16 packing)
    tk = min(tk, _round_up(m, 128))   # lane-aligned reduction tile
    n_pad = _round_up(n, tm)
    m_pad = _round_up(m, tk)

    # Zero padding keeps the math exact: padded adjacency columns multiply
    # zero embedding rows; padded output rows / columns are sliced off.
    adj_p = _pad2d(adj, n_pad, m_pad, jnp.bfloat16)
    emb_p = _pad2d(emb, m_pad, hp, jnp.bfloat16)
    w_p = _pad2d(w, hp, hp, jnp.float32)
    res_p = _pad2d(resid, n_pad, hp, jnp.float32)

    grid = (n_pad // tm, m_pad // tk)
    kernel = functools.partial(_gcn_hop_kernel, alpha=float(alpha),
                               beta=float(beta))

    cost = pl.CostEstimate(
        flops=int(2 * n_pad * m_pad * hp + 2 * n_pad * hp * hp),
        transcendentals=int(n_pad * hp),
        bytes_accessed=int(adj_p.size * 2 + emb_p.size * 2 + w_p.size * 4
                           + res_p.size * 4 + n_pad * hp * 4),
    )

    out = pl.pallas_call(
        kernel,
        out_shape=jax.ShapeDtypeStruct((n_pad, hp), jnp.float32),
        grid_spec=pltpu.PrefetchScalarGridSpec(
            num_scalar_prefetch=0,
            grid=grid,
            in_specs=[
                pl.BlockSpec((tm, tk), lambda i, k: (i, k)),   # adjacency
                pl.BlockSpec((tk, hp), lambda i, k: (k, 0)),   # embeddings
                pl.BlockSpec((hp, hp), lambda i, k: (0, 0)),   # hop weight
                pl.BlockSpec((tm, hp), lambda i, k: (i, 0)),   # residual rows
            ],
            out_specs=pl.BlockSpec((tm, hp), lambda i, k: (i, 0)),
        ),
        compiler_params=pltpu.CompilerParams(
            dimension_semantics=("parallel", "arbitrary"),
            vmem_limit_bytes=64 * 1024 * 1024,
        ),
        cost_estimate=cost,
    )(adj_p, emb_p, w_p, res_p)
    return out[:n, :h]


# ---------------------------------------------------------------------------
# GraphRec module (forward only)
# ---------------------------------------------------------------------------
class GraphRec:
    def __init__(self, n_users, n_items, hidden, hop, drop, key):
        # The reference module hardcodes hop = 1 regardless of the argument.
        self.hop = 1
        self.hidden = hidden
        self.dropout = drop
        self.n_users = n_users
        self.n_items = n_items

        def xavier_uniform(k, fan_in, fan_out):
            bound = jnp.sqrt(6.0 / (fan_in + fan_out))
            return jax.random.uniform(k, (fan_in, fan_out), jnp.float32,
                                      -bound, bound)

        keys = jax.random.split(key, 2 * self.hop)
        self.social_W = [xavier_uniform(keys[k], hidden, hidden)
                         for k in range(self.hop)]
        self.item_W = [xavier_uniform(keys[self.hop + k], hidden, hidden)
                       for k in range(self.hop)]

    def GCN_s(self, user_embs, S):
        # TODO(synk): F.dropout on the dense adjacency is training-time
        # randomness; this forward runs in eval mode, so it is skipped.
        x = user_embs
        for k in range(self.hop):
            x = gcn_hop(S, x, self.social_W[k], resid=x, alpha=1.0, beta=1.0)
        return x

    def GCN_a(self, users_emb, items_emb, A):
        all_emb = jnp.concatenate([users_emb, items_emb], axis=0)
        if self.hop == 1:
            # mean([e0, tanh((A e0) W)]) == 0.5 * tanh((A e0) W) + 0.5 * e0,
            # fused into a single streaming pass over A.
            light_out = gcn_hop(A, all_emb, self.item_W[0], resid=all_emb,
                                alpha=0.5, beta=0.5)
        else:  # generic fallback (dead code: self.hop is forced to 1)
            cur = all_emb
            acc = all_emb
            for k in range(self.hop):
                cur = gcn_hop(A, cur, self.item_W[k], resid=cur,
                              alpha=1.0, beta=0.0)
                acc = acc + cur
            light_out = acc / (self.hop + 1)
        users = light_out[: self.n_users]
        items = light_out[self.n_users:]
        return users, items

    def forward(self, users, pos, neg, user_embs, item_embs, S, A):
        all_user_embs_S = self.GCN_s(user_embs, S)
        all_user_embs_A, all_item_embs = self.GCN_a(user_embs, item_embs, A)
        all_user_embs = 0.5 * all_user_embs_S + 0.5 * all_user_embs_A
        users_emb = all_user_embs[users]
        pos_emb = all_item_embs[pos]
        neg_emb = all_item_embs[neg]
        return users_emb, pos_emb, neg_emb

    # ---- plain-JAX loss helpers (elementwise, no Pallas needed) ------------
    def rec_loss(self, user_emb, pos_emb, neg_emb):
        pos_scores = jnp.sum(user_emb * pos_emb, axis=1)
        neg_scores = jnp.sum(user_emb * neg_emb, axis=1)
        return -jnp.mean(jax.nn.log_sigmoid(pos_scores - neg_scores))

    def l2_loss(self, *weights):
        return 0.5 * sum(jnp.mean(jnp.square(w)) for w in weights)

    def reg_loss(self, users, pos, neg, user_embs, item_embs):
        return self.l2_loss(user_embs[users], item_embs[pos], item_embs[neg])


# ---------------------------------------------------------------------------
# Pure-JAX f32 reference of the forward pass (correctness check)
# ---------------------------------------------------------------------------
def forward_ref(model, users, pos, neg, user_embs, item_embs, S, A):
    x = user_embs
    for k in range(model.hop):
        x = jnp.tanh((S @ x) @ model.social_W[k]) + x
    all_user_embs_S = x

    all_emb = jnp.concatenate([user_embs, item_embs], axis=0)
    embs = [all_emb]
    cur = all_emb
    for k in range(model.hop):
        cur = jnp.tanh((A @ cur) @ model.item_W[k])
        embs.append(cur)
    light_out = jnp.mean(jnp.stack(embs, axis=1), axis=1)
    all_user_embs_A = light_out[: model.n_users]
    all_item_embs = light_out[model.n_users:]

    all_user_embs = 0.5 * all_user_embs_S + 0.5 * all_user_embs_A
    return all_user_embs[users], all_item_embs[pos], all_item_embs[neg]


if __name__ == "__main__":
    key = jax.random.PRNGKey(0)
    n_users, n_items, hidden, batch = 96, 160, 32, 4
    n_all = n_users + n_items

    (k_model, k_ue, k_ie, k_s, k_a, k_u, k_p, k_n) = jax.random.split(key, 8)

    model = GraphRec(n_users, n_items, hidden, hop=2, drop=0.1, key=k_model)

    user_embs = jax.random.normal(k_ue, (n_users, hidden), jnp.float32)
    item_embs = jax.random.normal(k_ie, (n_items, hidden), jnp.float32)

    S = jax.random.uniform(k_s, (n_users, n_users), jnp.float32)
    S = S / jnp.sum(S, axis=1, keepdims=True)
    A = jax.random.uniform(k_a, (n_all, n_all), jnp.float32)
    A = A / jnp.sum(A, axis=1, keepdims=True)

    users = jax.random.randint(k_u, (batch,), 0, n_users)
    pos = jax.random.randint(k_p, (batch,), 0, n_items)
    neg = jax.random.randint(k_n, (batch,), 0, n_items)

    outs = model.forward(users, pos, neg, user_embs, item_embs, S, A)
    outs = jax.block_until_ready(outs)
    assert all(tuple(o.shape) == (batch, hidden) for o in outs)

    # Full-forward check against the pure-JAX f32 reference (bf16 adjacency
    # streaming in the kernel -> small tolerance).
    refs = forward_ref(model, users, pos, neg, user_embs, item_embs, S, A)
    for got, want in zip(outs, refs):
        assert jnp.allclose(got, want, atol=1e-2, rtol=1e-2), float(
            jnp.max(jnp.abs(got - want)))

    # Extra check exercising a multi-tile grid (4 row tiles x 2 k tiles),
    # which also exercises the out-ref-as-accumulator carry across k.
    all_emb = jnp.concatenate([user_embs, item_embs], axis=0)
    got_tiled = gcn_hop(A, all_emb, model.item_W[0], resid=all_emb,
                        alpha=0.5, beta=0.5, tm=64, tk=128)
    got_tiled = jax.block_until_ready(got_tiled)
    want_tiled = 0.5 * jnp.tanh((A @ all_emb) @ model.item_W[0]) + 0.5 * all_emb
    assert jnp.allclose(got_tiled, want_tiled, atol=1e-2, rtol=1e-2)

    print("KERNEL_OK")
</pallas_src>

<mosaic_0001>
module attributes {stable_mosaic.version = 11 : i64} {
  func.func @_gcn_hop_kernel(%arg0: i32, %arg1: i32, %arg2: memref<96x128xbf16, #tpu.memory_space<vmem>>, %arg3: memref<128x128xbf16, #tpu.memory_space<vmem>>, %arg4: memref<128x128xf32, #tpu.memory_space<vmem>>, %arg5: memref<96x128xf32, #tpu.memory_space<vmem>>, %arg6: memref<96x128xf32, #tpu.memory_space<vmem>>) attributes {dimension_semantics = [#tpu.dimension_semantics<parallel>, #tpu.dimension_semantics<arbitrary>], iteration_bounds = array<i64: 1, 1>, scalar_prefetch = 0 : i64, scratch_operands = 0 : i64, tpu.core_type = #tpu.core_type<tc>, window_params = [{transform_indices = @transform_0, window_bounds = array<i64: 96, 128>}, {transform_indices = @transform_1, window_bounds = array<i64: 128, 128>}, {pipeline_mode = #tpu.pipeline_mode<synchronous>, transform_indices = @transform_2, window_bounds = array<i64: 128, 128>}, {transform_indices = @transform_3, window_bounds = array<i64: 96, 128>}, {transform_indices = @transform_4, window_bounds = array<i64: 96, 128>}]} {
    %c0_i32 = arith.constant 0 : i32
    %0 = arith.cmpi eq, %arg1, %c0_i32 : i32
    %1 = arith.extui %0 : i1 to i32
    %c0_i32_0 = arith.constant 0 : i32
    %2 = arith.cmpi ne, %1, %c0_i32_0 : i32
    scf.if %2 {
      %cst_10 = arith.constant 0.000000e+00 : f32
      %12 = vector.broadcast %cst_10 : f32 to vector<96x128xf32>
      %c0_11 = arith.constant 0 : index
      %c0_12 = arith.constant 0 : index
      %13 = vector.load %arg6[%c0_11, %c0_12] : memref<96x128xf32, #tpu.memory_space<vmem>>, vector<96x128xf32>
      tpu.vector_store %arg6[%c0_11, %c0_12], %12 {strides = array<i32>} : memref<96x128xf32, #tpu.memory_space<vmem>>, vector<96x128xf32>,
    } else {
    }
    %c0 = arith.constant 0 : index
    %c0_1 = arith.constant 0 : index
    %3 = vector.load %arg6[%c0, %c0_1] : memref<96x128xf32, #tpu.memory_space<vmem>>, vector<96x128xf32>
    %c0_2 = arith.constant 0 : index
    %c0_3 = arith.constant 0 : index
    %4 = vector.load %arg2[%c0_2, %c0_3] : memref<96x128xbf16, #tpu.memory_space<vmem>>, vector<96x128xbf16>
    %c0_4 = arith.constant 0 : index
    %c0_5 = arith.constant 0 : index
    %5 = vector.load %arg3[%c0_4, %c0_5] : memref<128x128xbf16, #tpu.memory_space<vmem>>, vector<128x128xbf16>
    %cst = arith.constant dense<0.000000e+00> : vector<96x128xf32>
    %6 = tpu.matmul %4, %5, %cst {dimension_numbers = #tpu.dot_dimension_numbers<[1], [0], [0], [1], [0, 0, 1, 1], [], []>} : vector<96x128xbf16>, vector<128x128xbf16>, vector<96x128xf32> -> vector<96x128xf32>
    %7 = arith.addf %3, %6 : vector<96x128xf32>
    %c0_6 = arith.constant 0 : index
    %c0_7 = arith.constant 0 : index
    %8 = vector.load %arg6[%c0_6, %c0_7] : memref<96x128xf32, #tpu.memory_space<vmem>>, vector<96x128xf32>
    tpu.vector_store %arg6[%c0_6, %c0_7], %7 {strides = array<i32>} : memref<96x128xf32, #tpu.memory_space<vmem>>, vector<96x128xf32>,
    %c0_i32_8 = arith.constant 0 : i32
    %9 = arith.cmpi eq, %arg1, %c0_i32_8 : i32
    %10 = arith.extui %9 : i1 to i32
    %c0_i32_9 = arith.constant 0 : i32
    %11 = arith.cmpi ne, %10, %c0_i32_9 : i32
    scf.if %11 {
      %c0_10 = arith.constant 0 : index
      %c0_11 = arith.constant 0 : index
      %12 = vector.load %arg6[%c0_10, %c0_11] : memref<96x128xf32, #tpu.memory_space<vmem>>, vector<96x128xf32>
      %c0_12 = arith.constant 0 : index
      %c0_13 = arith.constant 0 : index
      %13 = vector.load %arg4[%c0_12, %c0_13] : memref<128x128xf32, #tpu.memory_space<vmem>>, vector<128x128xf32>
      %cst_14 = arith.constant dense<0.000000e+00> : vector<96x128xf32>
      %14 = tpu.matmul %12, %13, %cst_14 {dimension_numbers = #tpu.dot_dimension_numbers<[1], [0], [0], [1], [0, 0, 1, 1], [], []>} : vector<96x128xf32>, vector<128x128xf32>, vector<96x128xf32> -> vector<96x128xf32>
      %15 = math.tanh %14 : vector<96x128xf32>
      %cst_15 = arith.constant 1.000000e+00 : f32
      %16 = vector.broadcast %cst_15 : f32 to vector<96x128xf32>
      %17 = arith.mulf %16, %15 : vector<96x128xf32>
      %c0_16 = arith.constant 0 : index
      %c0_17 = arith.constant 0 : index
      %18 = vector.load %arg5[%c0_16, %c0_17] : memref<96x128xf32, #tpu.memory_space<vmem>>, vector<96x128xf32>
      %cst_18 = arith.constant 1.000000e+00 : f32
      %19 = vector.broadcast %cst_18 : f32 to vector<96x128xf32>
      %20 = arith.mulf %19, %18 : vector<96x128xf32>
      %21 = arith.addf %17, %20 : vector<96x128xf32>
      %c0_19 = arith.constant 0 : index
      %c0_20 = arith.constant 0 : index
      %22 = vector.load %arg6[%c0_19, %c0_20] : memref<96x128xf32, #tpu.memory_space<vmem>>, vector<96x128xf32>
      tpu.vector_store %arg6[%c0_19, %c0_20], %21 {strides = array<i32>} : memref<96x128xf32, #tpu.memory_space<vmem>>, vector<96x128xf32>,
    } else {
    }
    return
  }
  func.func @transform_0(%arg0: i32, %arg1: i32) -> (i32, i32) {
    %c0_i32 = arith.constant 0 : i32
    return %arg0, %arg1 : i32, i32
  }
  func.func @transform_1(%arg0: i32, %arg1: i32) -> (i32, i32) {
    %c0_i32 = arith.constant 0 : i32
    %c0_i32_0 = arith.constant 0 : i32
    return %arg1, %c0_i32 : i32, i32
  }
  func.func @transform_2(%arg0: i32, %arg1: i32) -> (i32, i32) {
    %c0_i32 = arith.constant 0 : i32
    %c0_i32_0 = arith.constant 0 : i32
    %c0_i32_1 = arith.constant 0 : i32
    return %c0_i32, %c0_i32_0 : i32, i32
  }
  func.func @transform_3(%arg0: i32, %arg1: i32) -> (i32, i32) {
    %c0_i32 = arith.constant 0 : i32
    %c0_i32_0 = arith.constant 0 : i32
    return %arg0, %c0_i32 : i32, i32
  }
  func.func @transform_4(%arg0: i32, %arg1: i32) -> (i32, i32) {
    %c0_i32 = arith.constant 0 : i32
    %c0_i32_0 = arith.constant 0 : i32
    return %arg0, %c0_i32 : i32, i32
  }
}

</mosaic_0001>

<llo_original>
// kernel: tpu_custom_call.1
$region0: #{tpu_custom_call.1}
  #allocation0 [shape = 'u32[]', space=smem, size = 0x4, offset = 0x4, fixed_abs, tag = 'smem constant byte address 0x4 - core index']
  #allocation1 [shape = 'u32[144,128]{1,0:T(1,128)}', space=vmem, size = 0x12000, scoped, tag = 'internal scratch']
  %s0 = inlined_call_operand.hbm [shape: bf16[96,128], index: 0, kind: input, shape index: {}]
  %s1 = inlined_call_operand.hbm [shape: bf16[128,128], index: 1, kind: input, shape index: {}]
  %s2 = inlined_call_operand.hbm [shape: f32[128,128], index: 2, kind: input, shape index: {}]
  %s3 = inlined_call_operand.hbm [shape: f32[96,128], index: 3, kind: input, shape index: {}]
  %s4 = inlined_call_operand.hbm [shape: f32[96,128], index: 4, kind: output, shape index: {}]
  %s5 = sld [smem:[#allocation0]]
  $region50: #{tpu_custom_call.1} parent=0
    _
  %s7 = ssub.s32 1, %s5
  %s8 = scalar_select 0, %s7, %s5
  $region1: #{tpu_custom_call.1} parent=0
    #allocation2 [shape = 'u8[24576]{0}', space=vmem, size = 0x6000, scoped, tag = 'input window, operand 0, single buffered']
    #allocation3 [shape = 's32[1]{0}', space=sflag, size = 0x4, scoped, tag = 'scoped memory for tpu_custom_call.1']
    #allocation4 [shape = 's32[1]{0}', space=sflag, size = 0x4, scoped, tag = 'scoped memory for tpu_custom_call.1']
    #allocation5 [shape = 'u8[32768]{0}', space=vmem, size = 0x8000, scoped, tag = 'input window, operand 1, single buffered']
    #allocation6 [shape = 's32[1]{0}', space=sflag, size = 0x4, scoped, tag = 'scoped memory for tpu_custom_call.1']
    #allocation7 [shape = 'u8[65536]{0}', space=vmem, size = 0x10000, scoped, tag = 'input window, operand 2, single buffered']
    #allocation8 [shape = 'u8[49152]{0}', space=vmem, size = 0xc000, scoped, tag = 'input window, operand 3, single buffered']
    #allocation9 [shape = 's32[1]{0}', space=sflag, size = 0x4, scoped, tag = 'scoped memory for tpu_custom_call.1']
    #allocation10 [shape = 'u8[49152]{0}', space=vmem, size = 0xc000, scoped, tag = 'output window, operand 0, single buffered']
    %9 = vsyncpa [#allocation3], 0
    %10 = vsyncpa [#allocation6], 0
    %11 = vsyncpa [#allocation9], 0
    %12 = vsyncpa [#allocation4], 0
    // Predicated region
    $region2: #{tpu_custom_call.1} parent=1 // pred_check
      _
    $region3: #{tpu_custom_call.1} parent=1 // pred_check_branch
      %14 = sbr.rel (0) target = $region5
    $region4: #{tpu_custom_call.1} parent=1 // pred_region
      %s16 = ssub.s32 768, 768
      %17 = vsyncadd [#allocation3], %s16
      %s18 = sshll.u32 [#allocation2], 4
      %s19 = int_to_ptr.vmem [resolvable:$true] %s18
      %24 = dma.hbm_to_vmem [thread:$0]  %s0, 768, %s19, [#allocation3], 64, 64, 4
    $region5: #{tpu_custom_call.1} parent=1 // pred_fallthru
      _
    // Predicated region
    $region6: #{tpu_custom_call.1} parent=1 // pred_check
      _
    $region7: #{tpu_custom_call.1} parent=1 // pred_check_branch
      %26 = sbr.rel (0) target = $region9
    $region8: #{tpu_custom_call.1} parent=1 // pred_region
      %s28 = ssub.s32 1024, 1024
      %29 = vsyncadd [#allocation6], %s28
      %s30 = sshll.u32 [#allocation5], 4
      %s31 = int_to_ptr.vmem [resolvable:$true] %s30
      %36 = dma.hbm_to_vmem [thread:$0]  %s1, 1024, %s31, [#allocation6], 64, 64, 4
    $region9: #{tpu_custom_call.1} parent=1 // pred_fallthru
      _
    // Predicated region
    $region10: #{tpu_custom_call.1} parent=1 // pred_check
      _
    $region11: #{tpu_custom_call.1} parent=1 // pred_check_branch
      %38 = sbr.rel (0) target = $region13
    $region12: #{tpu_custom_call.1} parent=1 // pred_region
      %s40 = ssub.s32 2048, 2048
      %41 = vsyncadd [#allocation6], %s40
      %s42 = sshll.u32 [#allocation7], 4
      %s43 = int_to_ptr.vmem [resolvable:$true] %s42
      %48 = dma.hbm_to_vmem [thread:$0]  %s2, 2048, %s43, [#allocation6], 128, 128, 8
    $region13: #{tpu_custom_call.1} parent=1 // pred_fallthru
      _
    // Predicated region
    $region14: #{tpu_custom_call.1} parent=1 // pred_check
      _
    $region15: #{tpu_custom_call.1} parent=1 // pred_check_branch
      %50 = sbr.rel (0) target = $region17
    $region16: #{tpu_custom_call.1} parent=1 // pred_region
      %s52 = ssub.s32 1536, 1536
      %53 = vsyncadd [#allocation9], %s52
      %s54 = sshll.u32 [#allocation8], 4
      %s55 = int_to_ptr.vmem [resolvable:$true] %s54
      %60 = dma.hbm_to_vmem [thread:$0]  %s3, 1536, %s55, [#allocation9], 128, 128, 8
    $region17: #{tpu_custom_call.1} parent=1 // pred_fallthru
      _
    // Predicated region
    $region18: #{tpu_custom_call.1} parent=1 // pred_check
      _
    $region19: #{tpu_custom_call.1} parent=1 // pred_check_branch
      %62 = sbr.rel (0) target = $region21
    $region20: #{tpu_custom_call.1} parent=1 // pred_region
      %63 = dma.done [#allocation3], 768
    $region21: #{tpu_custom_call.1} parent=1 // pred_fallthru
      _
    // Predicated region
    $region22: #{tpu_custom_call.1} parent=1 // pred_check
      _
    $region23: #{tpu_custom_call.1} parent=1 // pred_check_branch
      %65 = sbr.rel (0) target = $region25
    $region24: #{tpu_custom_call.1} parent=1 // pred_region
      %66 = dma.done [#allocation6], 1024
    $region25: #{tpu_custom_call.1} parent=1 // pred_fallthru
      _
    // Predicated region
    $region26: #{tpu_custom_call.1} parent=1 // pred_check
      _
    $region27: #{tpu_custom_call.1} parent=1 // pred_check_branch
      %68 = sbr.rel (0) target = $region29
    $region28: #{tpu_custom_call.1} parent=1 // pred_region
      %69 = dma.done [#allocation6], 2048
    $region29: #{tpu_custom_call.1} parent=1 // pred_fallthru
      _
    // Predicated region
    $region30: #{tpu_custom_call.1} parent=1 // pred_check
      _
    $region31: #{tpu_custom_call.1} parent=1 // pred_check_branch
      %71 = sbr.rel (0) target = $region33
    $region32: #{tpu_custom_call.1} parent=1 // pred_region
      %72 = dma.done [#allocation9], 1536
    $region33: #{tpu_custom_call.1} parent=1 // pred_fallthru
      _
    %p74 = scmp.eq.s32.totalorder 0, 0
    // Predicated region
    $region34: #{tpu_custom_call.1} parent=1 // pred_check
      %p75 = pneg %p74
    $region35: #{tpu_custom_call.1} parent=1 // pred_check_branch
      %77 = sbr.rel (%p75) target = $region37
    $region36: #{tpu_custom_call.1} parent=1 // pred_region
      %78 = vst [vmem:[#allocation10] sm:$0xff] 0.0
      %79 = vst [vmem:[#allocation10 + $0x8] sm:$0xff] 0.0
      %80 = vst [vmem:[#allocation10 + $0x10] sm:$0xff] 0.0
      %81 = vst [vmem:[#allocation10 + $0x18] sm:$0xff] 0.0
      %82 = vst [vmem:[#allocation10 + $0x20] sm:$0xff] 0.0
      %83 = vst [vmem:[#allocation10 + $0x28] sm:$0xff] 0.0
      %84 = vst [vmem:[#allocation10 + $0x30] sm:$0xff] 0.0
      %85 = vst [vmem:[#allocation10 + $0x38] sm:$0xff] 0.0
      %86 = vst [vmem:[#allocation10 + $0x40] sm:$0xff] 0.0
      %87 = vst [vmem:[#allocation10 + $0x48] sm:$0xff] 0.0
      %88 = vst [vmem:[#allocation10 + $0x50] sm:$0xff] 0.0
      %89 = vst [vmem:[#allocation10 + $0x58] sm:$0xff] 0.0
    $region37: #{tpu_custom_call.1} parent=1 // pred_fallthru
      _
    %v90 = vld [vmem:[#allocation10] sm:$0xff]
    %v91 = vld [vmem:[#allocation10 + $0x8] sm:$0xff]
    %v92 = vld [vmem:[#allocation10 + $0x10] sm:$0xff]
    %v93 = vld [vmem:[#allocation10 + $0x18] sm:$0xff]
    %v94 = vld [vmem:[#allocation10 + $0x20] sm:$0xff]
    %v95 = vld [vmem:[#allocation10 + $0x28] sm:$0xff]
    %v96 = vld [vmem:[#allocation10 + $0x30] sm:$0xff]
    %v97 = vld [vmem:[#allocation10 + $0x38] sm:$0xff]
    %v98 = vld [vmem:[#allocation10 + $0x40] sm:$0xff]
    %v99 = vld [vmem:[#allocation10 + $0x48] sm:$0xff]
    %v100 = vld [vmem:[#allocation10 + $0x50] sm:$0xff]
    %v101 = vld [vmem:[#allocation10 + $0x58] sm:$0xff]
    %v102 = vld [vmem:[#allocation2] sm:$0xf]
    %v103 = vld [vmem:[#allocation2 + $0x4] sm:$0xf]
    %v104 = vld [vmem:[#allocation2 + $0x8] sm:$0xf]
    %v105 = vld [vmem:[#allocation2 + $0xc] sm:$0xf]
    %v106 = vld [vmem:[#allocation2 + $0x10] sm:$0xf]
    %v107 = vld [vmem:[#allocation2 + $0x14] sm:$0xf]
    %v108 = vld [vmem:[#allocation2 + $0x18] sm:$0xf]
    %v109 = vld [vmem:[#allocation2 + $0x1c] sm:$0xf]
    %v110 = vld [vmem:[#allocation2 + $0x20] sm:$0xf]
    %v111 = vld [vmem:[#allocation2 + $0x24] sm:$0xf]
    %v112 = vld [vmem:[#allocation2 + $0x28] sm:$0xf]
    %v113 = vld [vmem:[#allocation2 + $0x2c] sm:$0xf]
    %v114 = vld [vmem:[#allocation5] sm:$0xf]
    %v115 = vld [vmem:[#allocation5 + $0x4] sm:$0xf]
    %v116 = vld [vmem:[#allocation5 + $0x8] sm:$0xf]
    %v117 = vld [vmem:[#allocation5 + $0xc] sm:$0xf]
    %v118 = vld [vmem:[#allocation5 + $0x10] sm:$0xf]
    %v119 = vld [vmem:[#allocation5 + $0x14] sm:$0xf]
    %v120 = vld [vmem:[#allocation5 + $0x18] sm:$0xf]
    %v121 = vld [vmem:[#allocation5 + $0x1c] sm:$0xf]
    %v122 = vld [vmem:[#allocation5 + $0x20] sm:$0xf]
    %v123 = vld [vmem:[#allocation5 + $0x24] sm:$0xf]
    %v124 = vld [vmem:[#allocation5 + $0x28] sm:$0xf]
    %v125 = vld [vmem:[#allocation5 + $0x2c] sm:$0xf]
    %v126 = vld [vmem:[#allocation5 + $0x30] sm:$0xf]
    %v127 = vld [vmem:[#allocation5 + $0x34] sm:$0xf]
    %v128 = vld [vmem:[#allocation5 + $0x38] sm:$0xf]
    %v129 = vld [vmem:[#allocation5 + $0x3c] sm:$0xf]
    %v142 = vunpack.c.l.b16 %v102
    %v143 = vunpack.c.l.b16 %v103
    %v144 = vunpack.c.l.b16 %v104
    %v145 = vunpack.c.l.b16 %v105
    %v146 = vunpack.c.l.b16 %v106
    %v147 = vunpack.c.l.b16 %v107
    %v148 = vunpack.c.l.b16 %v108
    %v149 = vunpack.c.l.b16 %v109
    %v150 = vunpack.c.l.b16 %v110
    %v151 = vunpack.c.l.b16 %v111
    %v152 = vunpack.c.l.b16 %v112
    %v153 = vunpack.c.l.b16 %v113
    %v154 = vpack.c.b16 %v143, %v142
    %v155 = vpack.c.b16 %v145, %v144
    %v156 = vpack.c.b16 %v147, %v146
    %v157 = vpack.c.b16 %v149, %v148
    %v158 = vpack.c.b16 %v151, %v150
    %v159 = vpack.c.b16 %v153, %v152
    %v182 = vunpack.c.l.b16 %v114
    %v183 = vunpack.c.l.b16 %v115
    %v184 = vunpack.c.l.b16 %v116
    %v185 = vunpack.c.l.b16 %v117
    %v186 = vunpack.c.l.b16 %v118
    %v187 = vunpack.c.l.b16 %v119
    %v188 = vunpack.c.l.b16 %v120
    %v189 = vunpack.c.l.b16 %v121
    %v190 = vunpack.c.l.b16 %v122
    %v191 = vunpack.c.l.b16 %v123
    %v192 = vunpack.c.l.b16 %v124
    %v193 = vunpack.c.l.b16 %v125
    %v194 = vunpack.c.l.b16 %v126
    %v195 = vunpack.c.l.b16 %v127
    %v196 = vunpack.c.l.b16 %v128
    %v197 = vunpack.c.l.b16 %v129
    %v198 = vpack.c.b16 %v183, %v182
    %v199 = vpack.c.b16 %v185, %v184
    %v200 = vpack.c.b16 %v187, %v186
    %v201 = vpack.c.b16 %v189, %v188
    %v202 = vpack.c.b16 %v191, %v190
    %v203 = vpack.c.b16 %v193, %v192
    %v204 = vpack.c.b16 %v195, %v194
    %v205 = vpack.c.b16 %v197, %v196
    %214 = vmatprep.subr.bf16.mxu0 0
    %215 = vmatpush1.bf16.msra.mxu0 %v198
    %216 = vmatprep.subr.bf16.mxu0 0
    %217 = vmatpush1.bf16.msra.mxu0 %v199
    %218 = vmatprep.subr.bf16.mxu0 0
    %219 = vmatpush1.bf16.msra.mxu0 %v200
    %220 = vmatprep.subr.bf16.mxu0 0
    %221 = vmatpush1.bf16.msra.mxu0 %v201
    %222 = vmatprep.subr.bf16.mxu0 0
    %223 = vmatpush1.bf16.msra.mxu0 %v202
    %224 = vmatprep.subr.bf16.mxu0 0
    %225 = vmatpush1.bf16.msra.mxu0 %v203
    %226 = vmatprep.subr.bf16.mxu0 0
    %227 = vmatpush1.bf16.msra.mxu0 %v204
    %228 = vmatprep.subr.bf16.mxu0 0
    %229 = vmatpush1.bf16.msra.mxu0 %v205
    %230 = vmatprep.subr.bf16.mxu0 0
    %231 = vmatpush1.bf16.msra.mxu0 0
    %232 = vmatprep.subr.bf16.mxu0 0
    %233 = vmatpush1.bf16.msra.mxu0 0
    %234 = vmatprep.subr.bf16.mxu0 0
    %235 = vmatpush1.bf16.msra.mxu0 0
    %236 = vmatprep.subr.bf16.mxu0 0
    %237 = vmatpush1.bf16.msra.mxu0 0
    %238 = vmatprep.subr.bf16.mxu0 0
    %239 = vmatpush1.bf16.msra.mxu0 0
    %240 = vmatprep.subr.bf16.mxu0 0
    %241 = vmatpush1.bf16.msra.mxu0 0
    %242 = vmatprep.subr.bf16.mxu0 0
    %243 = vmatpush1.bf16.msra.mxu0 0
    %244 = vmatprep.subr.bf16.mxu0 0
    %245 = vmatpush1.bf16.msra.mxu0 0
    %246 = vmatprep.mubr.bf16.mxu0 0
    %247 = vmatmul.mubr.bf16.gmra.mrb[0].mxu0 %v154
    %v248 = vpop.f32.mrb[0].mxu0
    %v249 = vadd.f32 0.0, %v248
    %v250 = vpop.f32.mrb[0].mxu0
    %v251 = vpop.f32.mrb[0].mxu0
    %v252 = vadd.f32 0.0, %v251
    %v253 = vpop.f32.mrb[0].mxu0
    %254 = vmatprep.mubr.bf16.mxu0 0
    %255 = vmatmul.mubr.bf16.gmra.mrb[0].mxu0 %v155
    %v256 = vpop.f32.mrb[0].mxu0
    %v257 = vadd.f32 0.0, %v256
    %v258 = vpop.f32.mrb[0].mxu0
    %v259 = vpop.f32.mrb[0].mxu0
    %v260 = vadd.f32 0.0, %v259
    %v261 = vpop.f32.mrb[0].mxu0
    %262 = vmatprep.mubr.bf16.mxu0 0
    %263 = vmatmul.mubr.bf16.gmra.mrb[0].mxu0 %v156
    %v264 = vpop.f32.mrb[0].mxu0
    %v265 = vadd.f32 0.0, %v264
    %v266 = vpop.f32.mrb[0].mxu0
    %v267 = vpop.f32.mrb[0].mxu0
    %v268 = vadd.f32 0.0, %v267
    %v269 = vpop.f32.mrb[0].mxu0
    %270 = vmatprep.mubr.bf16.mxu0 0
    %271 = vmatmul.mubr.bf16.gmra.mrb[0].mxu0 %v157
    %v272 = vpop.f32.mrb[0].mxu0
    %v273 = vadd.f32 0.0, %v272
    %v274 = vpop.f32.mrb[0].mxu0
    %v275 = vpop.f32.mrb[0].mxu0
    %v276 = vadd.f32 0.0, %v275
    %v277 = vpop.f32.mrb[0].mxu0
    %278 = vmatprep.mubr.bf16.mxu0 0
    %279 = vmatmul.mubr.bf16.gmra.mrb[0].mxu0 %v158
    %v280 = vpop.f32.mrb[0].mxu0
    %v281 = vadd.f32 0.0, %v280
    %v282 = vpop.f32.mrb[0].mxu0
    %v283 = vpop.f32.mrb[0].mxu0
    %v284 = vadd.f32 0.0, %v283
    %v285 = vpop.f32.mrb[0].mxu0
    %286 = vmatprep.mubr.bf16.mxu0 0
    %287 = vmatmul.mubr.bf16.gmra.mrb[0].mxu0 %v159
    %v288 = vpop.f32.mrb[0].mxu0
    %v289 = vadd.f32 0.0, %v288
    %v290 = vpop.f32.mrb[0].mxu0
    %v291 = vpop.f32.mrb[0].mxu0
    %v292 = vadd.f32 0.0, %v291
    %v293 = vpop.f32.mrb[0].mxu0
    %294 = vdwg.mxu0
    %v295 = vadd.f32 %v90, %v249
    %v296 = vadd.f32 %v91, %v252
    %v297 = vadd.f32 %v92, %v257
    %v298 = vadd.f32 %v93, %v260
    %v299 = vadd.f32 %v94, %v265
    %v300 = vadd.f32 %v95, %v268
    %v301 = vadd.f32 %v96, %v273
    %v302 = vadd.f32 %v97, %v276
    %v303 = vadd.f32 %v98, %v281
    %v304 = vadd.f32 %v99, %v284
    %v305 = vadd.f32 %v100, %v289
    %v306 = vadd.f32 %v101, %v292
    %307 = vst [vmem:[#allocation10] sm:$0xff] %v295
    %308 = vst [vmem:[#allocation10 + $0x8] sm:$0xff] %v296
    %309 = vst [vmem:[#allocation10 + $0x10] sm:$0xff] %v297
    %310 = vst [vmem:[#allocation10 + $0x18] sm:$0xff] %v298
    %311 = vst [vmem:[#allocation10 + $0x20] sm:$0xff] %v299
    %312 = vst [vmem:[#allocation10 + $0x28] sm:$0xff] %v300
    %313 = vst [vmem:[#allocation10 + $0x30] sm:$0xff] %v301
    %314 = vst [vmem:[#allocation10 + $0x38] sm:$0xff] %v302
    %315 = vst [vmem:[#allocation10 + $0x40] sm:$0xff] %v303
    %316 = vst [vmem:[#allocation10 + $0x48] sm:$0xff] %v304
    %317 = vst [vmem:[#allocation10 + $0x50] sm:$0xff] %v305
    %318 = vst [vmem:[#allocation10 + $0x58] sm:$0xff] %v306
    // Predicated region
    $region38: #{tpu_custom_call.1} parent=1 // pred_check
      %p319 = pneg %p74
    $region39: #{tpu_custom_call.1} parent=1 // pred_check_branch
      %321 = sbr.rel (%p319) target = $region41
    $region40: #{tpu_custom_call.1} parent=1 // pred_region
      %v322 = vld [vmem:[#allocation10] sm:$0xff]
      %v323 = vld [vmem:[#allocation10 + $0x8] sm:$0xff]
      %v324 = vld [vmem:[#allocation10 + $0x10] sm:$0xff]
      %v325 = vld [vmem:[#allocation10 + $0x18] sm:$0xff]
      %v326 = vld [vmem:[#allocation10 + $0x20] sm:$0xff]
      %v327 = vld [vmem:[#allocation10 + $0x28] sm:$0xff]
      %v328 = vld [vmem:[#allocation10 + $0x30] sm:$0xff]
      %v329 = vld [vmem:[#allocation10 + $0x38] sm:$0xff]
      %v330 = vld [vmem:[#allocation10 + $0x40] sm:$0xff]
      %v331 = vld [vmem:[#allocation10 + $0x48] sm:$0xff]
      %v332 = vld [vmem:[#allocation10 + $0x50] sm:$0xff]
      %v333 = vld [vmem:[#allocation10 + $0x58] sm:$0xff]
      %v334 = vld [vmem:[#allocation7] sm:$0xff]
      %v335 = vld [vmem:[#allocation7 + $0x8] sm:$0xff]
      %v336 = vld [vmem:[#allocation7 + $0x10] sm:$0xff]
      %v337 = vld [vmem:[#allocation7 + $0x18] sm:$0xff]
      %v338 = vld [vmem:[#allocation7 + $0x20] sm:$0xff]
      %v339 = vld [vmem:[#allocation7 + $0x28] sm:$0xff]
      %v340 = vld [vmem:[#allocation7 + $0x30] sm:$0xff]
      %v341 = vld [vmem:[#allocation7 + $0x38] sm:$0xff]
      %v342 = vld [vmem:[#allocation7 + $0x40] sm:$0xff]
      %v343 = vld [vmem:[#allocation7 + $0x48] sm:$0xff]
      %v344 = vld [vmem:[#allocation7 + $0x50] sm:$0xff]
      %v345 = vld [vmem:[#allocation7 + $0x58] sm:$0xff]
      %v346 = vld [vmem:[#allocation7 + $0x60] sm:$0xff]
      %v347 = vld [vmem:[#allocation7 + $0x68] sm:$0xff]
      %v348 = vld [vmem:[#allocation7 + $0x70] sm:$0xff]
      %v349 = vld [vmem:[#allocation7 + $0x78] sm:$0xff]
      %350 = vmatprep.subr.mxu0 0.0
      %351 = vmatpush1.msra.mxu0 %v334
      %352 = vmatprep.subr.mxu0 0.0
      %353 = vmatpush1.msra.mxu0 %v335
      %354 = vmatprep.subr.mxu0 0.0
      %355 = vmatpush1.msra.mxu0 %v336
      %356 = vmatprep.subr.mxu0 0.0
      %357 = vmatpush1.msra.mxu0 %v337
      %358 = vmatprep.subr.mxu0 0.0
      %359 = vmatpush1.msra.mxu0 %v338
      %360 = vmatprep.subr.mxu0 0.0
      %361 = vmatpush1.msra.mxu0 %v339
      %362 = vmatprep.subr.mxu0 0.0
      %363 = vmatpush1.msra.mxu0 %v340
      %364 = vmatprep.subr.mxu0 0.0
      %365 = vmatpush1.msra.mxu0 %v341
      %366 = vmatprep.subr.mxu0 0.0
      %367 = vmatpush1.msra.mxu0 %v342
      %368 = vmatprep.subr.mxu0 0.0
      %369 = vmatpush1.msra.mxu0 %v343
      %370 = vmatprep.subr.mxu0 0.0
      %371 = vmatpush1.msra.mxu0 %v344
      %372 = vmatprep.subr.mxu0 0.0
      %373 = vmatpush1.msra.mxu0 %v345
      %374 = vmatprep.subr.mxu0 0.0
      %375 = vmatpush1.msra.mxu0 %v346
      %376 = vmatprep.subr.mxu0 0.0
      %377 = vmatpush1.msra.mxu0 %v347
      %378 = vmatprep.subr.mxu0 0.0
      %379 = vmatpush1.msra.mxu0 %v348
      %380 = vmatprep.subr.mxu0 0.0
      %381 = vmatpush1.msra.mxu0 %v349
      %382 = vmatprep.subr.mxu0 0.0
      %383 = vmatpush1.msra.mxu0 0.0
      %384 = vmatprep.subr.mxu0 0.0
      %385 = vmatpush1.msra.mxu0 0.0
      %386 = vmatprep.subr.mxu0 0.0
      %387 = vmatpush1.msra.mxu0 0.0
      %388 = vmatprep.subr.mxu0 0.0
      %389 = vmatpush1.msra.mxu0 0.0
      %390 = vmatprep.subr.mxu0 0.0
      %391 = vmatpush1.msra.mxu0 0.0
      %392 = vmatprep.subr.mxu0 0.0
      %393 = vmatpush1.msra.mxu0 0.0
      %394 = vmatprep.subr.mxu0 0.0
      %395 = vmatpush1.msra.mxu0 0.0
      %396 = vmatprep.subr.mxu0 0.0
      %397 = vmatpush1.msra.mxu0 0.0
      %398 = vmatprep.subr.mxu0 0.0
      %399 = vmatpush1.msra.mxu0 0.0
      %400 = vmatprep.subr.mxu0 0.0
      %401 = vmatpush1.msra.mxu0 0.0
      %402 = vmatprep.subr.mxu0 0.0
      %403 = vmatpush1.msra.mxu0 0.0
      %404 = vmatprep.subr.mxu0 0.0
      %405 = vmatpush1.msra.mxu0 0.0
      %406 = vmatprep.subr.mxu0 0.0
      %407 = vmatpush1.msra.mxu0 0.0
      %408 = vmatprep.subr.mxu0 0.0
      %409 = vmatpush1.msra.mxu0 0.0
      %410 = vmatprep.subr.mxu0 0.0
      %411 = vmatpush1.msra.mxu0 0.0
      %412 = vmatprep.subr.mxu0 0.0
      %413 = vmatpush1.msra.mxu0 0.0
      %414 = vmatprep.mubr.f32.mxu0 0.0
      %415 = vmatmul.mubr.f32.gmra.mrb[0].mxu0 %v322
      %v416 = vpop.f32.mrb[0].mxu0
      %v417 = vadd.f32 0.0, %v416
      %v418 = vpop.f32.mrb[0].mxu0
      %419 = vmatprep.mubr.f32.mxu0 0.0
      %420 = vmatmul.mubr.f32.gmra.mrb[0].mxu0 %v323
      %v421 = vpop.f32.mrb[0].mxu0
      %v422 = vadd.f32 0.0, %v421
      %v423 = vpop.f32.mrb[0].mxu0
      %424 = vmatprep.mubr.f32.mxu0 0.0
      %425 = vmatmul.mubr.f32.gmra.mrb[0].mxu0 %v324
      %v426 = vpop.f32.mrb[0].mxu0
      %v427 = vadd.f32 0.0, %v426
      %v428 = vpop.f32.mrb[0].mxu0
      %429 = vmatprep.mubr.f32.mxu0 0.0
      %430 = vmatmul.mubr.f32.gmra.mrb[0].mxu0 %v325
      %v431 = vpop.f32.mrb[0].mxu0
      %v432 = vadd.f32 0.0, %v431
      %v433 = vpop.f32.mrb[0].mxu0
      %434 = vmatprep.mubr.f32.mxu0 0.0
      %435 = vmatmul.mubr.f32.gmra.mrb[0].mxu0 %v326
      %v436 = vpop.f32.mrb[0].mxu0
      %v437 = vadd.f32 0.0, %v436
      %v438 = vpop.f32.mrb[0].mxu0
      %439 = vmatprep.mubr.f32.mxu0 0.0
      %440 = vmatmul.mubr.f32.gmra.mrb[0].mxu0 %v327
      %v441 = vpop.f32.mrb[0].mxu0
      %v442 = vadd.f32 0.0, %v441
      %v443 = vpop.f32.mrb[0].mxu0
      %444 = vmatprep.mubr.f32.mxu0 0.0
      %445 = vmatmul.mubr.f32.gmra.mrb[0].mxu0 %v328
      %v446 = vpop.f32.mrb[0].mxu0
      %v447 = vadd.f32 0.0, %v446
      %v448 = vpop.f32.mrb[0].mxu0
      %449 = vmatprep.mubr.f32.mxu0 0.0
      %450 = vmatmul.mubr.f32.gmra.mrb[0].mxu0 %v329
      %v451 = vpop.f32.mrb[0].mxu0
      %v452 = vadd.f32 0.0, %v451
      %v453 = vpop.f32.mrb[0].mxu0
      %454 = vmatprep.mubr.f32.mxu0 0.0
      %455 = vmatmul.mubr.f32.gmra.mrb[0].mxu0 %v330
      %v456 = vpop.f32.mrb[0].mxu0
      %v457 = vadd.f32 0.0, %v456
      %v458 = vpop.f32.mrb[0].mxu0
      %459 = vmatprep.mubr.f32.mxu0 0.0
      %460 = vmatmul.mubr.f32.gmra.mrb[0].mxu0 %v331
      %v461 = vpop.f32.mrb[0].mxu0
      %v462 = vadd.f32 0.0, %v461
      %v463 = vpop.f32.mrb[0].mxu0
      %464 = vmatprep.mubr.f32.mxu0 0.0
      %465 = vmatmul.mubr.f32.gmra.mrb[0].mxu0 %v332
      %v466 = vpop.f32.mrb[0].mxu0
      %v467 = vadd.f32 0.0, %v466
      %v468 = vpop.f32.mrb[0].mxu0
      %469 = vmatprep.mubr.f32.mxu0 0.0
      %470 = vmatmul.mubr.f32.gmra.mrb[0].mxu0 %v333
      %v471 = vpop.f32.mrb[0].mxu0
      %v472 = vadd.f32 0.0, %v471
      %v473 = vpop.f32.mrb[0].mxu0
      %474 = vdwg.mxu0
      %v475 = vtanh.pop %v417
      %v476 = vtanh.pop %v422
      %v477 = vtanh.pop %v427
      %v478 = vtanh.pop %v432
      %v479 = vtanh.pop %v437
      %v480 = vtanh.pop %v442
      %v481 = vtanh.pop %v447
      %v482 = vtanh.pop %v452
      %v483 = vtanh.pop %v457
      %v484 = vtanh.pop %v462
      %v485 = vtanh.pop %v467
      %v486 = vtanh.pop %v472
      %v487 = vld [vmem:[#allocation8] sm:$0xff]
      %v488 = vld [vmem:[#allocation8 + $0x8] sm:$0xff]
      %v489 = vld [vmem:[#allocation8 + $0x10] sm:$0xff]
      %v490 = vld [vmem:[#allocation8 + $0x18] sm:$0xff]
      %v491 = vld [vmem:[#allocation8 + $0x20] sm:$0xff]
      %v492 = vld [vmem:[#allocation8 + $0x28] sm:$0xff]
      %v493 = vld [vmem:[#allocation8 + $0x30] sm:$0xff]
      %v494 = vld [vmem:[#allocation8 + $0x38] sm:$0xff]
      %v495 = vld [vmem:[#allocation8 + $0x40] sm:$0xff]
      %v496 = vld [vmem:[#allocation8 + $0x48] sm:$0xff]
      %v497 = vld [vmem:[#allocation8 + $0x50] sm:$0xff]
      %v498 = vld [vmem:[#allocation8 + $0x58] sm:$0xff]
      %v499 = vadd.f32 %v475, %v487
      %v500 = vadd.f32 %v476, %v488
      %v501 = vadd.f32 %v477, %v489
      %v502 = vadd.f32 %v478, %v490
      %v503 = vadd.f32 %v479, %v491
      %v504 = vadd.f32 %v480, %v492
      %v505 = vadd.f32 %v481, %v493
      %v506 = vadd.f32 %v482, %v494
      %v507 = vadd.f32 %v483, %v495
      %v508 = vadd.f32 %v484, %v496
      %v509 = vadd.f32 %v485, %v497
      %v510 = vadd.f32 %v486, %v498
      %511 = vst [vmem:[#allocation10] sm:$0xff] %v499
      %512 = vst [vmem:[#allocation10 + $0x8] sm:$0xff] %v500
      %513 = vst [vmem:[#allocation10 + $0x10] sm:$0xff] %v501
      %514 = vst [vmem:[#allocation10 + $0x18] sm:$0xff] %v502
      %515 = vst [vmem:[#allocation10 + $0x20] sm:$0xff] %v503
      %516 = vst [vmem:[#allocation10 + $0x28] sm:$0xff] %v504
      %517 = vst [vmem:[#allocation10 + $0x30] sm:$0xff] %v505
      %518 = vst [vmem:[#allocation10 + $0x38] sm:$0xff] %v506
      %519 = vst [vmem:[#allocation10 + $0x40] sm:$0xff] %v507
      %520 = vst [vmem:[#allocation10 + $0x48] sm:$0xff] %v508
      %521 = vst [vmem:[#allocation10 + $0x50] sm:$0xff] %v509
      %522 = vst [vmem:[#allocation10 + $0x58] sm:$0xff] %v510
    $region41: #{tpu_custom_call.1} parent=1 // pred_fallthru
      _
    // Predicated region
    $region42: #{tpu_custom_call.1} parent=1 // pred_check
      _
    $region43: #{tpu_custom_call.1} parent=1 // pred_check_branch
      %524 = sbr.rel (0) target = $region45
    $region44: #{tpu_custom_call.1} parent=1 // pred_region
      %s526 = ssub.s32 1536, 1536
      %527 = vsyncadd [#allocation4], %s526
      %s528 = sshll.u32 [#allocation10], 4
      %s529 = int_to_ptr.vmem [resolvable:$true] %s528
      %534 = dma.vmem_to_hbm [thread:$0]  %s529, 1536, %s4, [#allocation4], 128, 128, 8
    $region45: #{tpu_custom_call.1} parent=1 // pred_fallthru
      _
    // Predicated region
    $region46: #{tpu_custom_call.1} parent=1 // pred_check
      _
    $region47: #{tpu_custom_call.1} parent=1 // pred_check_branch
      %536 = sbr.rel (0) target = $region49
    $region48: #{tpu_custom_call.1} parent=1 // pred_region
      %537 = dma.done [#allocation4], 1536
    $region49: #{tpu_custom_call.1} parent=1 // pred_fallthru
      _
    %538 = vsyncpa [#allocation3], 1
    %539 = vsyncpa [#allocation6], 1
    %540 = vsyncpa [#allocation9], 1
    %541 = vsyncpa [#allocation4], 1

</llo_original>
